<compile_context>
chip_gen: v7x
topology: tpu7x:2x2x1
jax: 0.10.0
libtpu: 0.0.40
codegen_flags: <defaults>
</compile_context>

<pallas_src>
import math
import functools

import jax
import jax.numpy as jnp
from jax import lax
from jax.experimental import pallas as pl
from jax.experimental.pallas import tpu as pltpu


def _round_up(x, m):
    return ((x + m - 1) // m) * m


@functools.lru_cache(maxsize=1)
def _vmem_limit():
    # Derive the scoped-VMEM budget from the chip (v5e/v6e: 128 MiB, v7x: 64 MiB physical).
    try:
        cap = int(pltpu.get_tpu_info().vmem_capacity_bytes)
    except Exception:
        cap = 128 * 1024 * 1024
    return max(32 * 1024 * 1024, min(cap // 2, 96 * 1024 * 1024))


# ----------------------------- tiled linear kernel -----------------------------
# y[M,N] = x[M,K] @ Wt[K,N] + b[N]  (+ residual[M,N]) (+ relu)
# Wt is the pre-transposed, pre-cast bf16 weight.  grid = (M/tm, N/tn, K/tk); the f32
# accumulation happens directly in the resident output block unless a bf16 output is
# requested (then a small f32 VMEM scratch is used).

def _linear_kernel(*refs, relu, n_k, has_residual, use_scratch):
    idx = 0
    x_ref = refs[idx]; idx += 1
    w_ref = refs[idx]; idx += 1
    b_ref = refs[idx]; idx += 1
    r_ref = None
    if has_residual:
        r_ref = refs[idx]; idx += 1
    o_ref = refs[idx]; idx += 1
    acc_ref = refs[idx] if use_scratch else o_ref

    k = pl.program_id(2)

    @pl.when(k == 0)
    def _():
        acc_ref[...] = jnp.zeros_like(acc_ref)

    acc_ref[...] += jnp.dot(x_ref[...], w_ref[...],
                            preferred_element_type=jnp.float32)

    @pl.when(k == n_k - 1)
    def _():
        y = acc_ref[...] + b_ref[...]
        if relu:
            y = jnp.maximum(y, 0.0)
        if has_residual:
            y = y + r_ref[...]
        o_ref[...] = y.astype(o_ref.dtype)


def linear_pallas(x2d, wt, b_row, *, relu=False, residual=None, out_dtype=jnp.float32,
                  tm_max=256, tn_max=512, tk_max=1024):
    """x2d: [M, K]; wt: [K, N] bf16 (pre-transposed weight); b_row: [1, N] f32."""
    M, K = x2d.shape
    Kw, N = wt.shape
    assert Kw == K

    tm = min(tm_max, _round_up(M, 16))       # 16: bf16 sublane packing
    tn = min(tn_max, _round_up(N, 128))
    tk = min(tk_max, _round_up(K, 128))
    Mp, Np, Kp = _round_up(M, tm), _round_up(N, tn), _round_up(K, tk)

    x = x2d if x2d.dtype == jnp.bfloat16 else x2d.astype(jnp.bfloat16)
    if (Mp, Kp) != (M, K):
        x = jnp.pad(x, ((0, Mp - M), (0, Kp - K)))
    w = wt
    if (Kp, Np) != (K, N):
        w = jnp.pad(w, ((0, Kp - K), (0, Np - N)))
    b = b_row
    if Np != N:
        b = jnp.pad(b, ((0, 0), (0, Np - N)))

    n_k = Kp // tk
    grid = (Mp // tm, Np // tn, n_k)

    in_specs = [
        pl.BlockSpec((tm, tk), lambda i, j, k: (i, k)),   # x
        pl.BlockSpec((tk, tn), lambda i, j, k: (k, j)),   # Wt (canonical [K,N] RHS)
        pl.BlockSpec((1, tn), lambda i, j, k: (0, j)),    # bias row
    ]
    args = [x, w, b]
    has_residual = residual is not None
    if has_residual:
        r = residual.astype(jnp.float32)
        if (Mp, Np) != (M, N):
            r = jnp.pad(r, ((0, Mp - M), (0, Np - N)))
        in_specs.append(pl.BlockSpec((tm, tn), lambda i, j, k: (i, j)))
        args.append(r)

    use_scratch = (out_dtype != jnp.float32)
    scratch = [pltpu.VMEM((tm, tn), jnp.float32)] if use_scratch else []

    out = pl.pallas_call(
        functools.partial(_linear_kernel, relu=relu, n_k=n_k,
                          has_residual=has_residual, use_scratch=use_scratch),
        out_shape=jax.ShapeDtypeStruct((Mp, Np), out_dtype),
        grid=grid,
        in_specs=in_specs,
        out_specs=pl.BlockSpec((tm, tn), lambda i, j, k: (i, j)),
        scratch_shapes=scratch,
        compiler_params=pltpu.CompilerParams(
            dimension_semantics=("parallel", "parallel", "arbitrary"),
            vmem_limit_bytes=_vmem_limit()),
    )(*args)

    if (Mp, Np) != (M, N):
        out = out[:M, :N]
    return out


# ----------------------------- flash-tiled attention kernel -----------------------------
# grid = (B, Sq/tq, Sk/tkv), KV axis trailing/"arbitrary".  q/k/v are [tile, H*dk] bf16
# column-blocks of the (possibly fused) projection outputs; mask is bf16, un-broadcast
# (1 or tq query rows), expanded to the -1e20 additive form in-kernel.  Online softmax
# keeps per-(row, head) running max / sum plus a [tq, H*dk] f32 accumulator in VMEM, and
# the lane-dense [tq, H*dk] output tile is written once at the last KV step.
# TODO(synk): heads are still dk-wide MXU calls; block-diagonal head packing not done.

def _flash_attn_kernel(q_ref, k_ref, v_ref, msk_ref, o_ref,
                       m_scr, l_scr, acc_scr, *, heads, dk, n_kv):
    kv = pl.program_id(2)

    @pl.when(kv == 0)
    def _():
        m_scr[...] = jnp.full_like(m_scr, -1e30)
        l_scr[...] = jnp.zeros_like(l_scr)
        acc_scr[...] = jnp.zeros_like(acc_scr)

    q = q_ref[...]                            # [tq, H*dk] bf16 (1/sqrt(dk) folded into W_q)
    k = k_ref[...]                            # [tkv, H*dk] bf16
    v = v_ref[...]                            # [tkv, H*dk] bf16
    tq, tkv = q.shape[0], k.shape[0]
    keep = jnp.broadcast_to(msk_ref[...], (tq, tkv)) != 0
    neg = jnp.float32(-1e20)

    for h in range(heads):
        hs = slice(h * dk, (h + 1) * dk)
        # scores [tq, tkv] f32: contract the last dim of both operands -> no transposes
        s = lax.dot_general(q[:, hs], k[:, hs],
                            dimension_numbers=(((1,), (1,)), ((), ())),
                            preferred_element_type=jnp.float32)
        s = jnp.where(keep, s, neg)
        m_prev = m_scr[:, h:h + 1]
        m_new = jnp.maximum(m_prev, jnp.max(s, axis=-1, keepdims=True))
        alpha = jnp.exp(m_prev - m_new)
        p = jnp.exp(s - m_new)
        l_scr[:, h:h + 1] = alpha * l_scr[:, h:h + 1] + jnp.sum(p, axis=-1, keepdims=True)
        pv = jnp.dot(p.astype(v.dtype), v[:, hs], preferred_element_type=jnp.float32)
        acc_scr[:, hs] = alpha * acc_scr[:, hs] + pv
        m_scr[:, h:h + 1] = m_new

    @pl.when(kv == n_kv - 1)
    def _():
        for h in range(heads):
            hs = slice(h * dk, (h + 1) * dk)
            o_ref[:, hs] = (acc_scr[:, hs] / l_scr[:, h:h + 1]).astype(o_ref.dtype)


def attention_pallas(q_arr, k_arr, v_arr, mask, head_num, d_model,
                     q_col=0, k_col=0, v_col=0, *, out_dtype=jnp.bfloat16,
                     tq_max=128, tkv_max=256):
    """q_arr: [B, Sq, Cq*D]; k_arr/v_arr: [B, Sk, C*D] bf16.  q/k/v live in column block
    q_col/k_col/v_col (block width D = d_model) so fused QKV/KV outputs are consumed
    without slicing.  mask: [B, Mq, Sk] with Mq in {1, Sq}; nonzero = attend.
    Returns lane-dense [B, Sq, D]."""
    B, Sq, _ = q_arr.shape
    Sk = k_arr.shape[1]
    Mq = mask.shape[1]
    assert Mq in (1, Sq)
    D = d_model
    dk = D // head_num

    tq = _round_up(Sq, 16) if Sq <= tq_max else tq_max
    tkv = _round_up(Sk, 16) if Sk <= tkv_max else tkv_max
    Sqp, Skp = _round_up(Sq, tq), _round_up(Sk, tkv)
    n_q, n_kv = Sqp // tq, Skp // tkv

    def pad_rows(a, rows):
        return a if a.shape[1] == rows else jnp.pad(a, ((0, 0), (0, rows - a.shape[1]), (0, 0)))

    qp = pad_rows(q_arr, Sqp)
    kp = pad_rows(k_arr, Skp)
    vp = pad_rows(v_arr, Skp)

    mb = mask.astype(jnp.bfloat16)
    m_rows = 1 if Mq == 1 else Sqp
    if mb.shape[1] != m_rows or mb.shape[2] != Skp:
        mb = jnp.pad(mb, ((0, 0), (0, m_rows - mb.shape[1]), (0, Skp - mb.shape[2])))
    if Mq == 1:
        msk_spec = pl.BlockSpec((None, 1, tkv), lambda b, qi, ki: (b, 0, ki))
    else:
        msk_spec = pl.BlockSpec((None, tq, tkv), lambda b, qi, ki: (b, qi, ki))

    out = pl.pallas_call(
        functools.partial(_flash_attn_kernel, heads=head_num, dk=dk, n_kv=n_kv),
        out_shape=jax.ShapeDtypeStruct((B, Sqp, D), out_dtype),
        grid=(B, n_q, n_kv),
        in_specs=[
            pl.BlockSpec((None, tq, D), lambda b, qi, ki: (b, qi, q_col)),
            pl.BlockSpec((None, tkv, D), lambda b, qi, ki: (b, ki, k_col)),
            pl.BlockSpec((None, tkv, D), lambda b, qi, ki: (b, ki, v_col)),
            msk_spec,
        ],
        out_specs=pl.BlockSpec((None, tq, D), lambda b, qi, ki: (b, qi, 0)),
        scratch_shapes=[
            pltpu.VMEM((tq, head_num), jnp.float32),   # running max, per (row, head)
            pltpu.VMEM((tq, head_num), jnp.float32),   # running sum
            pltpu.VMEM((tq, D), jnp.float32),          # output accumulator [tq, H*dk]
        ],
        compiler_params=pltpu.CompilerParams(
            dimension_semantics=("parallel", "parallel", "arbitrary"),
            vmem_limit_bytes=_vmem_limit()),
    )(qp, kp, vp, mb)

    return out[:, :Sq, :] if Sqp != Sq else out


# ----------------------------- LayerNorm kernel (row-tiled) -----------------------------
# Torch-module variant: a * (x - mean) / (std + eps) + b, std uses N-1 (unbiased).
# Reads/accumulates f32, writes bf16 (feeds matmul consumers).

def _layernorm_kernel(x_ref, a_ref, b_ref, o_ref, *, eps, denom):
    x = x_ref[...]
    mean = jnp.mean(x, axis=-1, keepdims=True)
    diff = x - mean
    var = jnp.sum(diff * diff, axis=-1, keepdims=True) * (1.0 / denom)
    inv = pl.reciprocal(jnp.sqrt(var) + eps)          # exact reciprocal (eps on std, torch-style)
    o_ref[...] = (a_ref[...] * diff * inv + b_ref[...]).astype(o_ref.dtype)


def layernorm_pallas(x2d, a2, b2, eps=1e-6, *, out_dtype=jnp.bfloat16, tm_max=256):
    M, D = x2d.shape
    tm = min(tm_max, _round_up(M, 8))
    Mp = _round_up(M, tm)
    x = x2d.astype(jnp.float32)
    if Mp != M:
        x = jnp.pad(x, ((0, Mp - M), (0, 0)))
    out = pl.pallas_call(
        functools.partial(_layernorm_kernel, eps=eps, denom=float(D - 1)),
        out_shape=jax.ShapeDtypeStruct((Mp, D), out_dtype),
        grid=(Mp // tm,),
        in_specs=[
            pl.BlockSpec((tm, D), lambda i: (i, 0)),
            pl.BlockSpec((1, D), lambda i: (0, 0)),
            pl.BlockSpec((1, D), lambda i: (0, 0)),
        ],
        out_specs=pl.BlockSpec((tm, D), lambda i: (i, 0)),
        compiler_params=pltpu.CompilerParams(dimension_semantics=("parallel",)),
    )(x, a2.reshape(1, D), b2.reshape(1, D))
    return out[:M] if Mp != M else out


# ----------------------------- parameter init (torch-style) -----------------------------

def init_linear(key, out_dim, in_dim):
    k1, k2 = jax.random.split(key)
    bound = 1.0 / math.sqrt(in_dim)
    W = jax.random.uniform(k1, (out_dim, in_dim), jnp.float32, -bound, bound)
    b = jax.random.uniform(k2, (out_dim,), jnp.float32, -bound, bound)
    return (W, b)


def init_layernorm(d):
    return (jnp.ones((d,), jnp.float32), jnp.zeros((d,), jnp.float32))


def init_mha(key, d_model):
    ks = jax.random.split(key, 4)
    return {'w_q': init_linear(ks[0], d_model, d_model),
            'w_k': init_linear(ks[1], d_model, d_model),
            'w_v': init_linear(ks[2], d_model, d_model),
            'w_o': init_linear(ks[3], d_model, d_model)}


def init_ffn(key, d_model):
    k1, k2 = jax.random.split(key)
    return {'w_1': init_linear(k1, d_model * 4, d_model),
            'w_2': init_linear(k2, d_model, d_model * 4)}


def init_encoder_layer(key, d_model):
    k1, k2 = jax.random.split(key)
    return {'mha': init_mha(k1, d_model), 'ln1': init_layernorm(d_model),
            'ffn': init_ffn(k2, d_model), 'ln2': init_layernorm(d_model)}


def init_decoder_layer(key, d_model):
    k1, k2, k3 = jax.random.split(key, 3)
    return {'self_mha': init_mha(k1, d_model), 'ln1': init_layernorm(d_model),
            'cross_mha': init_mha(k2, d_model), 'ln2': init_layernorm(d_model),
            'ffn': init_ffn(k3, d_model), 'ln3': init_layernorm(d_model)}


def init_transformer(key, vocab_num, input_d, d_model, N):
    ks = jax.random.split(key, 4 + 2 * N)
    return {
        'emb_table': jax.random.normal(ks[0], (vocab_num, d_model), jnp.float32),
        'embedding_linear': init_linear(ks[1], d_model, input_d),
        'gen_proj_1': init_linear(ks[2], d_model * 4, d_model),
        'gen_proj_2': init_linear(ks[3], vocab_num, d_model * 4),
        'encoders': [init_encoder_layer(ks[4 + i], d_model) for i in range(N)],
        'decoders': [init_decoder_layer(ks[4 + N + i], d_model) for i in range(N)],
    }


# ----------------------------- one-time weight preparation -----------------------------

def prepare_linear(p):
    W, b = p
    # Pre-transpose to [K, N] bf16 ONCE (MXU-canonical RHS); bias as a [1, N] f32 row.
    return {'wt': jnp.asarray(W.T, dtype=jnp.bfloat16),
            'b': jnp.asarray(b, dtype=jnp.float32).reshape(1, -1)}


def prepare_mha(p, head_num):
    Wq, bq = p['w_q']
    Wk, bk = p['w_k']
    Wv, bv = p['w_v']
    d_model = Wq.shape[0]
    scale = 1.0 / math.sqrt(d_model // head_num)
    Wq_s, bq_s = Wq * scale, bq * scale       # fold 1/sqrt(d_k) into the Q projection
    return {
        'qkv': prepare_linear((jnp.concatenate([Wq_s, Wk, Wv], 0),
                               jnp.concatenate([bq_s, bk, bv], 0))),
        'q':   prepare_linear((Wq_s, bq_s)),
        'kv':  prepare_linear((jnp.concatenate([Wk, Wv], 0),
                               jnp.concatenate([bk, bv], 0))),
        'o':   prepare_linear(p['w_o']),
    }


def prepare_transformer(raw, head_num):
    def prep_ffn(f):
        return {'w_1': prepare_linear(f['w_1']), 'w_2': prepare_linear(f['w_2'])}
    prepped = {
        'emb_table': raw['emb_table'],
        'embedding_linear': prepare_linear(raw['embedding_linear']),
        'gen_proj_1': prepare_linear(raw['gen_proj_1']),
        'gen_proj_2': prepare_linear(raw['gen_proj_2']),
        'encoders': [], 'decoders': [],
    }
    for e in raw['encoders']:
        prepped['encoders'].append({'mha': prepare_mha(e['mha'], head_num),
                                    'ln1': e['ln1'], 'ffn': prep_ffn(e['ffn']),
                                    'ln2': e['ln2']})
    for d in raw['decoders']:
        prepped['decoders'].append({'self_mha': prepare_mha(d['self_mha'], head_num),
                                    'ln1': d['ln1'],
                                    'cross_mha': prepare_mha(d['cross_mha'], head_num),
                                    'ln2': d['ln2'], 'ffn': prep_ffn(d['ffn']),
                                    'ln3': d['ln3']})
    return prepped


# ----------------------------- model glue (plain JAX) -----------------------------

def make_positional_encoding(max_seq_len, d_model):
    position = jnp.arange(0, max_seq_len, dtype=jnp.float32)[:, None]
    pow_term = jnp.arange(0, d_model, 2, dtype=jnp.float32) / jnp.float32(d_model)
    div_term = jnp.power(jnp.float32(10000.0), pow_term)
    pe = jnp.zeros((max_seq_len, d_model), jnp.float32)
    pe = pe.at[:, 0::2].set(jnp.sin(position / div_term))
    pe = pe.at[:, 1::2].set(jnp.cos(position / div_term))
    return pe[None, :, :]


def apply_linear(lp, x, *, relu=False, residual=None, out_dtype=jnp.float32):
    B, S, Din = x.shape
    N = lp['wt'].shape[1]
    res2d = residual.reshape(B * S, N) if residual is not None else None
    y = linear_pallas(x.reshape(B * S, Din), lp['wt'], lp['b'],
                      relu=relu, residual=res2d, out_dtype=out_dtype)
    return y.reshape(B, S, N)


def apply_layernorm(lp, x, eps=1e-6):
    a2, b2 = lp
    B, S, D = x.shape
    return layernorm_pallas(x.reshape(B * S, D), a2, b2, eps).reshape(B, S, D)


def mha_forward(pp, query, key_value, mask, head_num, residual):
    """split_dim == None path of the torch module; residual add fused into the w_o linear."""
    B, Sq, D = query.shape
    Sk = key_value.shape[1]
    if query is key_value:
        # self-attention: fused QKV projection (one kernel, one read of the activation)
        qkv = linear_pallas(query.reshape(B * Sq, D), pp['qkv']['wt'], pp['qkv']['b'],
                            out_dtype=jnp.bfloat16).reshape(B, Sq, 3 * D)
        if D % 128 == 0:
            q_a = k_a = v_a = qkv
            cols = (0, 1, 2)                  # column-block indexing, no slicing copies
        else:
            q_a, k_a, v_a = qkv[..., :D], qkv[..., D:2 * D], qkv[..., 2 * D:]
            cols = (0, 0, 0)
    else:
        # cross-attention: Q from the decoder stream, fused KV from the encoder memory
        q_a = linear_pallas(query.reshape(B * Sq, D), pp['q']['wt'], pp['q']['b'],
                            out_dtype=jnp.bfloat16).reshape(B, Sq, D)
        kv = linear_pallas(key_value.reshape(B * Sk, D), pp['kv']['wt'], pp['kv']['b'],
                           out_dtype=jnp.bfloat16).reshape(B, Sk, 2 * D)
        if D % 128 == 0:
            k_a = v_a = kv
            cols = (0, 0, 1)
        else:
            k_a, v_a = kv[..., :D], kv[..., D:]
            cols = (0, 0, 0)

    attn = attention_pallas(q_a, k_a, v_a, mask, head_num, D,
                            q_col=cols[0], k_col=cols[1], v_col=cols[2])   # [B, Sq, D] bf16
    return apply_linear(pp['o'], attn, residual=residual, out_dtype=jnp.float32)


def ffn_forward(p, x, residual):
    h = apply_linear(p['w_1'], x, relu=True, out_dtype=jnp.bfloat16)
    return apply_linear(p['w_2'], h, residual=residual, out_dtype=jnp.float32)


def encoder_forward(p, x, mask, head_num):
    nx = apply_layernorm(p['ln1'], x)
    x = mha_forward(p['mha'], nx, nx, mask, head_num, residual=x)
    nx = apply_layernorm(p['ln2'], x)
    x = ffn_forward(p['ffn'], nx, residual=x)
    return x


def decoder_forward(p, target, memory, target_mask, encoder_mask, head_num):
    nx = apply_layernorm(p['ln1'], target)
    target = mha_forward(p['self_mha'], nx, nx, target_mask, head_num, residual=target)
    nx = apply_layernorm(p['ln2'], target)
    target = mha_forward(p['cross_mha'], nx, memory, encoder_mask, head_num, residual=target)
    nx = apply_layernorm(p['ln3'], target)
    target = ffn_forward(p['ffn'], nx, residual=target)
    return target


def transformer_forward(params, pe_enc, pe_dec, d_model, head_num,
                        inp, token_type, target, input_mask, target_mask, labels=None):
    del token_type  # unused by the reference forward as well
    # encoder side
    lin_in = apply_linear(params['embedding_linear'], inp, out_dtype=jnp.float32)
    x = lin_in + pe_enc[:, :lin_in.shape[1]]                       # dropout = identity
    for enc_p in params['encoders']:
        x = encoder_forward(enc_p, x, input_mask, head_num)
    memory = x.astype(jnp.bfloat16)        # cast once; reused by every decoder cross-attn
    # decoder side (embedding gather stays in JAX)
    tgt = params['emb_table'][target] * math.sqrt(d_model) + pe_dec[:, :target.shape[1]]
    for dec_p in params['decoders']:
        tgt = decoder_forward(dec_p, tgt, memory, target_mask, input_mask, head_num)
    # generator
    h = apply_linear(params['gen_proj_1'], tgt, out_dtype=jnp.bfloat16)
    lm_logits = apply_linear(params['gen_proj_2'], h, out_dtype=jnp.float32)

    loss = None
    if labels is not None:
        # TODO(synk): cross-entropy (log_softmax + gather, ignore_index=0) kept in plain JAX.
        shift_logits = lm_logits[..., :-1, :]
        shift_labels = labels[..., 1:]
        V = lm_logits.shape[-1]
        flat_logits = shift_logits.reshape(-1, V)
        flat_labels = shift_labels.reshape(-1)
        logp = jax.nn.log_softmax(flat_logits, axis=-1)
        nll = -jnp.take_along_axis(logp, flat_labels[:, None], axis=-1)[:, 0]
        valid = (flat_labels != 0).astype(jnp.float32)
        loss = jnp.sum(nll * valid) / jnp.maximum(jnp.sum(valid), 1.0)
    return lm_logits, loss


# ----------------------------- demo -----------------------------

if __name__ == "__main__":
    vocab_num = 50
    input_d = 16
    d_model = 128        # lane-aligned so the fused-QKV column-block path is exercised
    max_seq_len = 8
    head_num = 8
    N = 2

    B = 2
    S_in = 8             # encoder sequence length (<= max_seq_len)
    S_t = 6              # decoder sequence length (<= max_seq_len * 3)

    root = jax.random.PRNGKey(0)
    k_params, k_in, k_tt, k_tg = jax.random.split(root, 4)

    raw_params = init_transformer(k_params, vocab_num, input_d, d_model, N)
    params = prepare_transformer(raw_params, head_num)   # weights pre-transposed/cast ONCE
    pe_enc = make_positional_encoding(max_seq_len, d_model)
    pe_dec = make_positional_encoding(max_seq_len * 3, d_model)

    inp = jax.random.normal(k_in, (B, S_in, input_d), jnp.float32)
    token_type = jax.random.randint(k_tt, (B, S_in), 0, 4)          # unused, as in reference
    target = jax.random.randint(k_tg, (B, S_t), 1, vocab_num)       # avoid pad index 0
    input_mask = jnp.ones((B, 1, S_in), jnp.int32)
    target_mask = jnp.broadcast_to(
        jnp.tril(jnp.ones((S_t, S_t), jnp.int32))[None], (B, S_t, S_t))
    labels = target

    lm_logits, loss = transformer_forward(
        params, pe_enc, pe_dec, d_model, head_num,
        inp, token_type, target, input_mask, target_mask, labels)

    jax.block_until_ready(lm_logits)
    jax.block_until_ready(loss)
    assert lm_logits.shape == (B, S_t, vocab_num)
    assert bool(jnp.isfinite(lm_logits).all())
    assert bool(jnp.isfinite(loss))
    print("KERNEL_OK")
</pallas_src>

<mosaic_0001>
module attributes {stable_mosaic.version = 11 : i64} {
  func.func @_linear_kernel(%arg0: i32, %arg1: i32, %arg2: i32, %arg3: memref<16x128xbf16, #tpu.memory_space<vmem>>, %arg4: memref<128x128xbf16, #tpu.memory_space<vmem>>, %arg5: memref<1x128xf32, #tpu.memory_space<vmem>>, %arg6: memref<16x128xf32, #tpu.memory_space<vmem>>) attributes {dimension_semantics = [#tpu.dimension_semantics<parallel>, #tpu.dimension_semantics<parallel>, #tpu.dimension_semantics<arbitrary>], iteration_bounds = array<i64: 1, 1, 1>, scalar_prefetch = 0 : i64, scratch_operands = 0 : i64, tpu.core_type = #tpu.core_type<tc>, window_params = [{transform_indices = @transform_0, window_bounds = array<i64: 16, 128>}, {transform_indices = @transform_1, window_bounds = array<i64: 128, 128>}, {transform_indices = @transform_2, window_bounds = array<i64: 1, 128>}, {transform_indices = @transform_3, window_bounds = array<i64: 16, 128>}]} {
    %c0_i32 = arith.constant 0 : i32
    %0 = arith.cmpi eq, %arg2, %c0_i32 : i32
    %1 = arith.extui %0 : i1 to i32
    %c0_i32_0 = arith.constant 0 : i32
    %2 = arith.cmpi ne, %1, %c0_i32_0 : i32
    scf.if %2 {
      %cst_10 = arith.constant 0.000000e+00 : f32
      %12 = vector.broadcast %cst_10 : f32 to vector<16x128xf32>
      %c0_11 = arith.constant 0 : index
      %c0_12 = arith.constant 0 : index
      %13 = vector.load %arg6[%c0_11, %c0_12] : memref<16x128xf32, #tpu.memory_space<vmem>>, vector<16x128xf32>
      tpu.vector_store %arg6[%c0_11, %c0_12], %12 {strides = array<i32>} : memref<16x128xf32, #tpu.memory_space<vmem>>, vector<16x128xf32>,
    } else {
    }
    %c0 = arith.constant 0 : index
    %c0_1 = arith.constant 0 : index
    %3 = vector.load %arg6[%c0, %c0_1] : memref<16x128xf32, #tpu.memory_space<vmem>>, vector<16x128xf32>
    %c0_2 = arith.constant 0 : index
    %c0_3 = arith.constant 0 : index
    %4 = vector.load %arg3[%c0_2, %c0_3] : memref<16x128xbf16, #tpu.memory_space<vmem>>, vector<16x128xbf16>
    %c0_4 = arith.constant 0 : index
    %c0_5 = arith.constant 0 : index
    %5 = vector.load %arg4[%c0_4, %c0_5] : memref<128x128xbf16, #tpu.memory_space<vmem>>, vector<128x128xbf16>
    %cst = arith.constant dense<0.000000e+00> : vector<16x128xf32>
    %6 = tpu.matmul %4, %5, %cst {dimension_numbers = #tpu.dot_dimension_numbers<[1], [0], [0], [1], [0, 0, 1, 1], [], []>} : vector<16x128xbf16>, vector<128x128xbf16>, vector<16x128xf32> -> vector<16x128xf32>
    %7 = arith.addf %3, %6 : vector<16x128xf32>
    %c0_6 = arith.constant 0 : index
    %c0_7 = arith.constant 0 : index
    %8 = vector.load %arg6[%c0_6, %c0_7] : memref<16x128xf32, #tpu.memory_space<vmem>>, vector<16x128xf32>
    tpu.vector_store %arg6[%c0_6, %c0_7], %7 {strides = array<i32>} : memref<16x128xf32, #tpu.memory_space<vmem>>, vector<16x128xf32>,
    %c0_i32_8 = arith.constant 0 : i32
    %9 = arith.cmpi eq, %arg2, %c0_i32_8 : i32
    %10 = arith.extui %9 : i1 to i32
    %c0_i32_9 = arith.constant 0 : i32
    %11 = arith.cmpi ne, %10, %c0_i32_9 : i32
    scf.if %11 {
      %c0_10 = arith.constant 0 : index
      %c0_11 = arith.constant 0 : index
      %12 = vector.load %arg6[%c0_10, %c0_11] : memref<16x128xf32, #tpu.memory_space<vmem>>, vector<16x128xf32>
      %c0_12 = arith.constant 0 : index
      %c0_13 = arith.constant 0 : index
      %13 = vector.load %arg5[%c0_12, %c0_13] : memref<1x128xf32, #tpu.memory_space<vmem>>, vector<1x128xf32>
      %14 = vector.broadcast %13 : vector<1x128xf32> to vector<16x128xf32>
      %15 = arith.addf %12, %14 : vector<16x128xf32>
      %c0_14 = arith.constant 0 : index
      %c0_15 = arith.constant 0 : index
      %16 = vector.load %arg6[%c0_14, %c0_15] : memref<16x128xf32, #tpu.memory_space<vmem>>, vector<16x128xf32>
      tpu.vector_store %arg6[%c0_14, %c0_15], %15 {strides = array<i32>} : memref<16x128xf32, #tpu.memory_space<vmem>>, vector<16x128xf32>,
    } else {
    }
    return
  }
  func.func @transform_0(%arg0: i32, %arg1: i32, %arg2: i32) -> (i32, i32) {
    %c0_i32 = arith.constant 0 : i32
    return %arg0, %arg2 : i32, i32
  }
  func.func @transform_1(%arg0: i32, %arg1: i32, %arg2: i32) -> (i32, i32) {
    %c0_i32 = arith.constant 0 : i32
    return %arg2, %arg1 : i32, i32
  }
  func.func @transform_2(%arg0: i32, %arg1: i32, %arg2: i32) -> (i32, i32) {
    %c0_i32 = arith.constant 0 : i32
    %c0_i32_0 = arith.constant 0 : i32
    return %c0_i32, %arg1 : i32, i32
  }
  func.func @transform_3(%arg0: i32, %arg1: i32, %arg2: i32) -> (i32, i32) {
    %c0_i32 = arith.constant 0 : i32
    return %arg0, %arg1 : i32, i32
  }
}

</mosaic_0001>

<llo_original>
// kernel: tpu_custom_call.1
$region0: #{tpu_custom_call.1}
  #allocation0 [shape = 'u32[]', space=smem, size = 0x4, offset = 0x4, fixed_abs, tag = 'smem constant byte address 0x4 - core index']
  #allocation1 [shape = 'u32[144,128]{1,0:T(1,128)}', space=vmem, size = 0x12000, scoped, tag = 'internal scratch']
  %s0 = inlined_call_operand.hbm [shape: bf16[16,128], index: 0, kind: input, shape index: {}]
  %s1 = inlined_call_operand.hbm [shape: bf16[128,128], index: 1, kind: input, shape index: {}]
  %s2 = inlined_call_operand.hbm [shape: f32[1,128], index: 2, kind: input, shape index: {}]
  %s3 = inlined_call_operand.hbm [shape: f32[16,128], index: 3, kind: output, shape index: {}]
  %s4 = sld [smem:[#allocation0]]
  $region42: #{tpu_custom_call.1} parent=0
    _
  %s6 = ssub.s32 1, %s4
  %s7 = scalar_select 0, %s6, %s4
  $region1: #{tpu_custom_call.1} parent=0
    #allocation2 [shape = 'u8[4096]{0}', space=vmem, size = 0x1000, scoped, tag = 'input window, operand 0, single buffered']
    #allocation3 [shape = 's32[1]{0}', space=sflag, size = 0x4, scoped, tag = 'scoped memory for tpu_custom_call.1']
    #allocation4 [shape = 's32[1]{0}', space=sflag, size = 0x4, scoped, tag = 'scoped memory for tpu_custom_call.1']
    #allocation5 [shape = 'u8[32768]{0}', space=vmem, size = 0x8000, scoped, tag = 'input window, operand 1, single buffered']
    #allocation6 [shape = 's32[1]{0}', space=sflag, size = 0x4, scoped, tag = 'scoped memory for tpu_custom_call.1']
    #allocation7 [shape = 'u8[512]{0}', space=vmem, size = 0x400, scoped, tag = 'input window, operand 2, single buffered']
    #allocation8 [shape = 'u8[8192]{0}', space=vmem, size = 0x2000, scoped, tag = 'output window, operand 0, single buffered']
    %8 = vsyncpa [#allocation3], 0
    %9 = vsyncpa [#allocation6], 0
    %10 = vsyncpa [#allocation4], 0
    // Predicated region
    $region2: #{tpu_custom_call.1} parent=1 // pred_check
      _
    $region3: #{tpu_custom_call.1} parent=1 // pred_check_branch
      %12 = sbr.rel (0) target = $region5
    $region4: #{tpu_custom_call.1} parent=1 // pred_region
      %s14 = ssub.s32 128, 128
      %15 = vsyncadd [#allocation3], %s14
      %s16 = sshll.u32 [#allocation2], 4
      %s17 = int_to_ptr.vmem [resolvable:$true] %s16
      %22 = dma.hbm_to_vmem [thread:$0]  %s0, 128, %s17, [#allocation3], 64, 64, 4
    $region5: #{tpu_custom_call.1} parent=1 // pred_fallthru
      _
    // Predicated region
    $region6: #{tpu_custom_call.1} parent=1 // pred_check
      _
    $region7: #{tpu_custom_call.1} parent=1 // pred_check_branch
      %24 = sbr.rel (0) target = $region9
    $region8: #{tpu_custom_call.1} parent=1 // pred_region
      %s26 = ssub.s32 1024, 1024
      %27 = vsyncadd [#allocation6], %s26
      %s28 = sshll.u32 [#allocation5], 4
      %s29 = int_to_ptr.vmem [resolvable:$true] %s28
      %34 = dma.hbm_to_vmem [thread:$0]  %s1, 1024, %s29, [#allocation6], 64, 64, 4
    $region9: #{tpu_custom_call.1} parent=1 // pred_fallthru
      _
    // Predicated region
    $region10: #{tpu_custom_call.1} parent=1 // pred_check
      _
    $region11: #{tpu_custom_call.1} parent=1 // pred_check_branch
      %36 = sbr.rel (0) target = $region13
    $region12: #{tpu_custom_call.1} parent=1 // pred_region
      %s38 = ssub.s32 16, 16
      %39 = vsyncadd [#allocation6], %s38
      %s41 = sshll.u32 [#allocation7], 4
      %s42 = int_to_ptr.vmem [resolvable:$true] %s41
      %44 = dma.hbm_to_vmem [thread:$0]  %s2, 16, %s42, [#allocation6]
    $region13: #{tpu_custom_call.1} parent=1 // pred_fallthru
      _
    // Predicated region
    $region14: #{tpu_custom_call.1} parent=1 // pred_check
      _
    $region15: #{tpu_custom_call.1} parent=1 // pred_check_branch
      %46 = sbr.rel (0) target = $region17
    $region16: #{tpu_custom_call.1} parent=1 // pred_region
      %47 = dma.done [#allocation3], 128
    $region17: #{tpu_custom_call.1} parent=1 // pred_fallthru
      _
    // Predicated region
    $region18: #{tpu_custom_call.1} parent=1 // pred_check
      _
    $region19: #{tpu_custom_call.1} parent=1 // pred_check_branch
      %49 = sbr.rel (0) target = $region21
    $region20: #{tpu_custom_call.1} parent=1 // pred_region
      %50 = dma.done [#allocation6], 1024
    $region21: #{tpu_custom_call.1} parent=1 // pred_fallthru
      _
    // Predicated region
    $region22: #{tpu_custom_call.1} parent=1 // pred_check
      _
    $region23: #{tpu_custom_call.1} parent=1 // pred_check_branch
      %52 = sbr.rel (0) target = $region25
    $region24: #{tpu_custom_call.1} parent=1 // pred_region
      %53 = dma.done [#allocation6], 16
    $region25: #{tpu_custom_call.1} parent=1 // pred_fallthru
      _
    %p55 = scmp.eq.s32.totalorder 0, 0
    // Predicated region
    $region26: #{tpu_custom_call.1} parent=1 // pred_check
      %p56 = pneg %p55
    $region27: #{tpu_custom_call.1} parent=1 // pred_check_branch
      %58 = sbr.rel (%p56) target = $region29
    $region28: #{tpu_custom_call.1} parent=1 // pred_region
      %59 = vst [vmem:[#allocation8] sm:$0xff] 0.0
      %60 = vst [vmem:[#allocation8 + $0x8] sm:$0xff] 0.0
    $region29: #{tpu_custom_call.1} parent=1 // pred_fallthru
      _
    %v61 = vld [vmem:[#allocation8] sm:$0xff]
    %v62 = vld [vmem:[#allocation8 + $0x8] sm:$0xff]
    %v63 = vld [vmem:[#allocation2] sm:$0xf]
    %v64 = vld [vmem:[#allocation2 + $0x4] sm:$0xf]
    %v65 = vld [vmem:[#allocation5] sm:$0xf]
    %v66 = vld [vmem:[#allocation5 + $0x4] sm:$0xf]
    %v67 = vld [vmem:[#allocation5 + $0x8] sm:$0xf]
    %v68 = vld [vmem:[#allocation5 + $0xc] sm:$0xf]
    %v69 = vld [vmem:[#allocation5 + $0x10] sm:$0xf]
    %v70 = vld [vmem:[#allocation5 + $0x14] sm:$0xf]
    %v71 = vld [vmem:[#allocation5 + $0x18] sm:$0xf]
    %v72 = vld [vmem:[#allocation5 + $0x1c] sm:$0xf]
    %v73 = vld [vmem:[#allocation5 + $0x20] sm:$0xf]
    %v74 = vld [vmem:[#allocation5 + $0x24] sm:$0xf]
    %v75 = vld [vmem:[#allocation5 + $0x28] sm:$0xf]
    %v76 = vld [vmem:[#allocation5 + $0x2c] sm:$0xf]
    %v77 = vld [vmem:[#allocation5 + $0x30] sm:$0xf]
    %v78 = vld [vmem:[#allocation5 + $0x34] sm:$0xf]
    %v79 = vld [vmem:[#allocation5 + $0x38] sm:$0xf]
    %v80 = vld [vmem:[#allocation5 + $0x3c] sm:$0xf]
    %v83 = vunpack.c.l.b16 %v63
    %v84 = vunpack.c.l.b16 %v64
    %v85 = vpack.c.b16 %v84, %v83
    %v103 = vunpack.c.l.b16 %v65
    %v104 = vunpack.c.l.b16 %v66
    %v105 = vunpack.c.l.b16 %v67
    %v106 = vunpack.c.l.b16 %v68
    %v107 = vunpack.c.l.b16 %v69
    %v108 = vunpack.c.l.b16 %v70
    %v109 = vunpack.c.l.b16 %v71
    %v110 = vunpack.c.l.b16 %v72
    %v111 = vunpack.c.l.b16 %v73
    %v112 = vunpack.c.l.b16 %v74
    %v113 = vunpack.c.l.b16 %v75
    %v114 = vunpack.c.l.b16 %v76
    %v115 = vunpack.c.l.b16 %v77
    %v116 = vunpack.c.l.b16 %v78
    %v117 = vunpack.c.l.b16 %v79
    %v118 = vunpack.c.l.b16 %v80
    %v119 = vpack.c.b16 %v104, %v103
    %v120 = vpack.c.b16 %v106, %v105
    %v121 = vpack.c.b16 %v108, %v107
    %v122 = vpack.c.b16 %v110, %v109
    %v123 = vpack.c.b16 %v112, %v111
    %v124 = vpack.c.b16 %v114, %v113
    %v125 = vpack.c.b16 %v116, %v115
    %v126 = vpack.c.b16 %v118, %v117
    %135 = vmatprep.subr.bf16.mxu0 0
    %136 = vmatpush1.bf16.msra.mxu0 %v119
    %137 = vmatprep.subr.bf16.mxu0 0
    %138 = vmatpush1.bf16.msra.mxu0 %v120
    %139 = vmatprep.subr.bf16.mxu0 0
    %140 = vmatpush1.bf16.msra.mxu0 %v121
    %141 = vmatprep.subr.bf16.mxu0 0
    %142 = vmatpush1.bf16.msra.mxu0 %v122
    %143 = vmatprep.subr.bf16.mxu0 0
    %144 = vmatpush1.bf16.msra.mxu0 %v123
    %145 = vmatprep.subr.bf16.mxu0 0
    %146 = vmatpush1.bf16.msra.mxu0 %v124
    %147 = vmatprep.subr.bf16.mxu0 0
    %148 = vmatpush1.bf16.msra.mxu0 %v125
    %149 = vmatprep.subr.bf16.mxu0 0
    %150 = vmatpush1.bf16.msra.mxu0 %v126
    %151 = vmatprep.subr.bf16.mxu0 0
    %152 = vmatpush1.bf16.msra.mxu0 0
    %153 = vmatprep.subr.bf16.mxu0 0
    %154 = vmatpush1.bf16.msra.mxu0 0
    %155 = vmatprep.subr.bf16.mxu0 0
    %156 = vmatpush1.bf16.msra.mxu0 0
    %157 = vmatprep.subr.bf16.mxu0 0
    %158 = vmatpush1.bf16.msra.mxu0 0
    %159 = vmatprep.subr.bf16.mxu0 0
    %160 = vmatpush1.bf16.msra.mxu0 0
    %161 = vmatprep.subr.bf16.mxu0 0
    %162 = vmatpush1.bf16.msra.mxu0 0
    %163 = vmatprep.subr.bf16.mxu0 0
    %164 = vmatpush1.bf16.msra.mxu0 0
    %165 = vmatprep.subr.bf16.mxu0 0
    %166 = vmatpush1.bf16.msra.mxu0 0
    %167 = vmatprep.mubr.bf16.mxu0 0
    %168 = vmatmul.mubr.bf16.gmra.mrb[0].mxu0 %v85
    %v169 = vpop.f32.mrb[0].mxu0
    %v170 = vadd.f32 0.0, %v169
    %v171 = vpop.f32.mrb[0].mxu0
    %v172 = vpop.f32.mrb[0].mxu0
    %v173 = vadd.f32 0.0, %v172
    %v174 = vpop.f32.mrb[0].mxu0
    %175 = vdwg.mxu0
    %v176 = vadd.f32 %v61, %v170
    %v177 = vadd.f32 %v62, %v173
    %178 = vst [vmem:[#allocation8] sm:$0xff] %v176
    %179 = vst [vmem:[#allocation8 + $0x8] sm:$0xff] %v177
    // Predicated region
    $region30: #{tpu_custom_call.1} parent=1 // pred_check
      %p180 = pneg %p55
    $region31: #{tpu_custom_call.1} parent=1 // pred_check_branch
      %182 = sbr.rel (%p180) target = $region33
    $region32: #{tpu_custom_call.1} parent=1 // pred_region
      %v183 = vld [vmem:[#allocation8] sm:$0xff]
      %v184 = vld [vmem:[#allocation8 + $0x8] sm:$0xff]
      %v185 = vld [vmem:[#allocation7] sm:$0x1]
      %v187 = vlaneseq
      %v188 = vshrl.u32 %v187, 7
      %v189 = vsub.s32 0, %v188
      %v190 = vrot.slane %v185, %v189
      %v192 = vadd.f32 %v183, %v190
      %v193 = vadd.f32 %v184, %v190
      %194 = vst [vmem:[#allocation8] sm:$0xff] %v192
      %195 = vst [vmem:[#allocation8 + $0x8] sm:$0xff] %v193
    $region33: #{tpu_custom_call.1} parent=1 // pred_fallthru
      _
    // Predicated region
    $region34: #{tpu_custom_call.1} parent=1 // pred_check
      _
    $region35: #{tpu_custom_call.1} parent=1 // pred_check_branch
      %197 = sbr.rel (0) target = $region37
    $region36: #{tpu_custom_call.1} parent=1 // pred_region
      %s199 = ssub.s32 256, 256
      %200 = vsyncadd [#allocation4], %s199
      %s201 = sshll.u32 [#allocation8], 4
      %s202 = int_to_ptr.vmem [resolvable:$true] %s201
      %207 = dma.vmem_to_hbm [thread:$0]  %s202, 256, %s3, [#allocation4], 128, 128, 8
    $region37: #{tpu_custom_call.1} parent=1 // pred_fallthru
      _
    // Predicated region
    $region38: #{tpu_custom_call.1} parent=1 // pred_check
      _
    $region39: #{tpu_custom_call.1} parent=1 // pred_check_branch
      %209 = sbr.rel (0) target = $region41
    $region40: #{tpu_custom_call.1} parent=1 // pred_region
      %210 = dma.done [#allocation4], 256
    $region41: #{tpu_custom_call.1} parent=1 // pred_fallthru
      _
    %211 = vsyncpa [#allocation3], 1
    %212 = vsyncpa [#allocation6], 1
    %213 = vsyncpa [#allocation4], 1

</llo_original>
